<compile_context>
chip_gen: v7x
topology: tpu7x:2x2x1
jax: 0.10.0
libtpu: 0.0.40
codegen_flags: <defaults>
</compile_context>

<pallas_src>
import functools

import jax
import jax.numpy as jnp
from jax.experimental import pallas as pl
from jax.experimental.pallas import tpu as pltpu


def _round_up(x, m):
    return ((x + m - 1) // m) * m


def _num_tensorcores():
    """Best-effort TensorCores-per-chip query (2 on v7x, 1 on v5e/v6e)."""
    try:
        return max(1, int(getattr(jax.devices()[0], "num_cores", 1)))
    except Exception:
        return 1


def _choose_batch_tile(B, batch_tile):
    """Pick (tile_rows, n_tiles) for the 1-D batch grid.

    Single-TC chips: one big block (no per-step overhead) up to `batch_tile`
    rows.  Multi-TC chips: at least `num_cores` balanced tiles when there is
    enough work, so the 'parallel' grid axis shards evenly across cores.
    """
    num_cores = _num_tensorcores()
    n_tiles = pl.cdiv(B, batch_tile)
    if num_cores > 1:
        n_tiles = max(n_tiles, min(num_cores, pl.cdiv(B, 8)))
    if n_tiles <= 1:
        # Full-array block; allowed even when B is not a multiple of 8.
        return B, 1
    tb = _round_up(pl.cdiv(B, n_tiles), 8)
    return tb, pl.cdiv(B, tb)


def qnet_kernel(x_ref, w1_ref, b1_ref, w2_ref, b2_ref, out_ref):
    # Layer 1: MXU matmul with f32 accumulation; bias + ReLU on the VPU in f32.
    h = jnp.dot(x_ref[...], w1_ref[...], preferred_element_type=jnp.float32)
    h = jnp.maximum(h + b1_ref[...], 0.0)                       # (TB, H_pad) f32
    # Layer 2: operands in the matmul dtype (bf16 fast path), f32 accumulation,
    # f32 bias add, lane-dense store.
    y = jnp.dot(h.astype(w2_ref.dtype), w2_ref[...],
                preferred_element_type=jnp.float32)             # (TB, A_pad) f32
    out_ref[...] = (y + b2_ref[...]).astype(out_ref.dtype)


@functools.partial(jax.jit, static_argnames=("n_actions", "batch_tile"))
def _qnet_forward(x, w1p, b1p, w2p, b2p, *, n_actions, batch_tile):
    B, S = x.shape
    S_pad, H_pad = w1p.shape
    A_pad = w2p.shape[1]

    # Only the contraction (feature) dim of x needs explicit zero padding; the
    # batch dim is left ragged for Pallas to handle.
    xp = x if S == S_pad else jnp.pad(x, ((0, 0), (0, S_pad - S)))
    xp = xp.astype(w1p.dtype)

    tb, n_tiles = _choose_batch_tile(B, batch_tile)

    out = pl.pallas_call(
        qnet_kernel,
        out_shape=jax.ShapeDtypeStruct((B, A_pad), jnp.float32),
        grid_spec=pltpu.PrefetchScalarGridSpec(
            num_scalar_prefetch=0,
            grid=(n_tiles,),
            in_specs=[
                pl.BlockSpec((tb, S_pad),    lambda i: (i, 0)),  # x: streamed
                # Constant (0, 0) index maps -> weights/biases stay VMEM-resident
                # across grid steps (no re-DMA on revisited blocks).
                pl.BlockSpec((S_pad, H_pad), lambda i: (0, 0)),
                pl.BlockSpec((1, H_pad),     lambda i: (0, 0)),
                pl.BlockSpec((H_pad, A_pad), lambda i: (0, 0)),
                pl.BlockSpec((1, A_pad),     lambda i: (0, 0)),
            ],
            out_specs=pl.BlockSpec((tb, A_pad), lambda i: (i, 0)),
        ),
        compiler_params=pltpu.CompilerParams(
            dimension_semantics=("parallel",),  # shards tiles across TCs on v7x
        ),
    )(xp, w1p, b1p, w2p, b2p)

    return out[:, :n_actions]


class QNet:
    """Pallas port of q_net: one-time padded/cast params + jitted forward."""

    def __init__(self, w1, b1, w2, b2, *, matmul_dtype=jnp.bfloat16,
                 batch_tile=1024):
        # One-time padding/casting (hoisted out of the per-call hot path):
        #   contraction dims (S, H) -> multiples of 8 (zeros must be real zeros),
        #   output dims (H, A)      -> multiples of 128 (lane-dense stores).
        S, H = w1.shape
        A = w2.shape[1]
        S_pad = _round_up(S, 8)
        H_pad = _round_up(H, 128)
        A_pad = _round_up(A, 128)
        f32 = jnp.float32
        self.w1p = (jnp.zeros((S_pad, H_pad), f32).at[:S, :H]
                    .set(w1.astype(f32)).astype(matmul_dtype))
        self.b1p = jnp.zeros((1, H_pad), f32).at[0, :H].set(b1.astype(f32))
        self.w2p = (jnp.zeros((H_pad, A_pad), f32).at[:H, :A]
                    .set(w2.astype(f32)).astype(matmul_dtype))
        self.b2p = jnp.zeros((1, A_pad), f32).at[0, :A].set(b2.astype(f32))
        self.n_states = int(S)
        self.n_actions = int(A)
        self.batch_tile = int(batch_tile)

    def __call__(self, x):
        return _qnet_forward(x, self.w1p, self.b1p, self.w2p, self.b2p,
                             n_actions=self.n_actions,
                             batch_tile=self.batch_tile)


def init_qnet_params(key, n_states, n_actions, hidden=50):
    """Synthetic init matching q_net.__init__ semantics.

    PyTorch: weight ~ Normal(0, 0.1); bias keeps default Linear init
    Uniform(-1/sqrt(fan_in), 1/sqrt(fan_in)). Weights returned (in, out).
    """
    if hidden < n_states:
        hidden = 2 * n_states
    k1, k2, k3, k4 = jax.random.split(key, 4)
    w1 = 0.1 * jax.random.normal(k1, (n_states, hidden), dtype=jnp.float32)
    bound1 = 1.0 / jnp.sqrt(jnp.float32(n_states))
    b1 = jax.random.uniform(k2, (hidden,), dtype=jnp.float32,
                            minval=-bound1, maxval=bound1)
    w2 = 0.1 * jax.random.normal(k3, (hidden, n_actions), dtype=jnp.float32)
    bound2 = 1.0 / jnp.sqrt(jnp.float32(hidden))
    b2 = jax.random.uniform(k4, (n_actions,), dtype=jnp.float32,
                            minval=-bound2, maxval=bound2)
    return w1, b1, w2, b2


def _reference(x, w1, b1, w2, b2):
    h = jnp.maximum(jnp.dot(x, w1, precision=jax.lax.Precision.HIGHEST) + b1, 0.0)
    return jnp.dot(h, w2, precision=jax.lax.Precision.HIGHEST) + b2


if __name__ == "__main__":
    # Small shapes consistent with the module; n_states=10 / n_actions=6 are
    # deliberately unaligned so every padding path is exercised.
    batch, n_states, hidden, n_actions = 4, 10, 50, 6

    key = jax.random.PRNGKey(0)
    kx, kp, kx2 = jax.random.split(key, 3)
    x = jax.random.normal(kx, (batch, n_states), dtype=jnp.float32)
    w1, b1, w2, b2 = init_qnet_params(kp, n_states, n_actions, hidden)

    # f32 matmul path (exact semantics).
    net_f32 = QNet(w1, b1, w2, b2, matmul_dtype=jnp.float32)
    out = jax.block_until_ready(net_f32(x))
    ref = _reference(x, w1, b1, w2, b2)
    assert out.shape == (batch, n_actions)
    assert jnp.allclose(out, ref, atol=1e-4, rtol=1e-4)

    # Larger batch: one grid step on single-TC chips, 2 balanced tiles on v7x.
    xb = jax.random.normal(kx2, (300, n_states), dtype=jnp.float32)
    out_b = jax.block_until_ready(net_f32(xb))
    ref_b = _reference(xb, w1, b1, w2, b2)
    assert out_b.shape == (300, n_actions)
    assert jnp.allclose(out_b, ref_b, atol=1e-4, rtol=1e-4)

    # Forced multi-tile grid with a ragged last batch tile (masked-store path).
    net_tiled = QNet(w1, b1, w2, b2, matmul_dtype=jnp.float32, batch_tile=128)
    out_t = jax.block_until_ready(net_tiled(xb))
    assert jnp.allclose(out_t, ref_b, atol=1e-4, rtol=1e-4)

    # Default bf16 matmul-operand fast path (MXU-native), f32 accumulation.
    net_bf16 = QNet(w1, b1, w2, b2)
    out_bf = jax.block_until_ready(net_bf16(xb))
    assert jnp.allclose(out_bf, ref_b, atol=5e-2, rtol=5e-2)

    print("KERNEL_OK")
</pallas_src>

<mosaic_0001>
module attributes {stable_mosaic.version = 11 : i64} {
  func.func @qnet_kernel(%arg0: i32, %arg1: memref<4x16xf32, #tpu.memory_space<vmem>>, %arg2: memref<16x128xf32, #tpu.memory_space<vmem>>, %arg3: memref<1x128xf32, #tpu.memory_space<vmem>>, %arg4: memref<128x128xf32, #tpu.memory_space<vmem>>, %arg5: memref<1x128xf32, #tpu.memory_space<vmem>>, %arg6: memref<4x128xf32, #tpu.memory_space<vmem>>) attributes {dimension_semantics = [#tpu.dimension_semantics<parallel>], iteration_bounds = array<i64: 1>, scalar_prefetch = 0 : i64, scratch_operands = 0 : i64, tpu.core_type = #tpu.core_type<tc>, window_params = [{transform_indices = @transform_0, window_bounds = array<i64: 4, 16>}, {pipeline_mode = #tpu.pipeline_mode<synchronous>, transform_indices = @transform_1, window_bounds = array<i64: 16, 128>}, {pipeline_mode = #tpu.pipeline_mode<synchronous>, transform_indices = @transform_2, window_bounds = array<i64: 1, 128>}, {pipeline_mode = #tpu.pipeline_mode<synchronous>, transform_indices = @transform_3, window_bounds = array<i64: 128, 128>}, {pipeline_mode = #tpu.pipeline_mode<synchronous>, transform_indices = @transform_4, window_bounds = array<i64: 1, 128>}, {transform_indices = @transform_5, window_bounds = array<i64: 4, 128>}]} {
    %c0 = arith.constant 0 : index
    %c0_0 = arith.constant 0 : index
    %0 = vector.load %arg1[%c0, %c0_0] : memref<4x16xf32, #tpu.memory_space<vmem>>, vector<4x16xf32>
    %c0_1 = arith.constant 0 : index
    %c0_2 = arith.constant 0 : index
    %1 = vector.load %arg2[%c0_1, %c0_2] : memref<16x128xf32, #tpu.memory_space<vmem>>, vector<16x128xf32>
    %cst = arith.constant dense<0.000000e+00> : vector<4x128xf32>
    %2 = tpu.matmul %0, %1, %cst {dimension_numbers = #tpu.dot_dimension_numbers<[1], [0], [0], [1], [0, 0, 1, 1], [], []>} : vector<4x16xf32>, vector<16x128xf32>, vector<4x128xf32> -> vector<4x128xf32>
    %c0_3 = arith.constant 0 : index
    %c0_4 = arith.constant 0 : index
    %3 = vector.load %arg3[%c0_3, %c0_4] : memref<1x128xf32, #tpu.memory_space<vmem>>, vector<1x128xf32>
    %4 = vector.broadcast %3 : vector<1x128xf32> to vector<4x128xf32>
    %5 = arith.addf %2, %4 : vector<4x128xf32>
    %cst_5 = arith.constant 0.000000e+00 : f32
    %6 = vector.broadcast %cst_5 : f32 to vector<4x128xf32>
    %7 = arith.maximumf %5, %6 : vector<4x128xf32>
    %c0_6 = arith.constant 0 : index
    %c0_7 = arith.constant 0 : index
    %8 = vector.load %arg4[%c0_6, %c0_7] : memref<128x128xf32, #tpu.memory_space<vmem>>, vector<128x128xf32>
    %cst_8 = arith.constant dense<0.000000e+00> : vector<4x128xf32>
    %9 = tpu.matmul %7, %8, %cst_8 {dimension_numbers = #tpu.dot_dimension_numbers<[1], [0], [0], [1], [0, 0, 1, 1], [], []>} : vector<4x128xf32>, vector<128x128xf32>, vector<4x128xf32> -> vector<4x128xf32>
    %c0_9 = arith.constant 0 : index
    %c0_10 = arith.constant 0 : index
    %10 = vector.load %arg5[%c0_9, %c0_10] : memref<1x128xf32, #tpu.memory_space<vmem>>, vector<1x128xf32>
    %11 = vector.broadcast %10 : vector<1x128xf32> to vector<4x128xf32>
    %12 = arith.addf %9, %11 : vector<4x128xf32>
    %c0_11 = arith.constant 0 : index
    %c0_12 = arith.constant 0 : index
    %13 = vector.load %arg6[%c0_11, %c0_12] : memref<4x128xf32, #tpu.memory_space<vmem>>, vector<4x128xf32>
    tpu.vector_store %arg6[%c0_11, %c0_12], %12 {strides = array<i32>} : memref<4x128xf32, #tpu.memory_space<vmem>>, vector<4x128xf32>,
    return
  }
  func.func @transform_0(%arg0: i32) -> (i32, i32) {
    %c0_i32 = arith.constant 0 : i32
    %c0_i32_0 = arith.constant 0 : i32
    return %arg0, %c0_i32 : i32, i32
  }
  func.func @transform_1(%arg0: i32) -> (i32, i32) {
    %c0_i32 = arith.constant 0 : i32
    %c0_i32_0 = arith.constant 0 : i32
    %c0_i32_1 = arith.constant 0 : i32
    return %c0_i32, %c0_i32_0 : i32, i32
  }
  func.func @transform_2(%arg0: i32) -> (i32, i32) {
    %c0_i32 = arith.constant 0 : i32
    %c0_i32_0 = arith.constant 0 : i32
    %c0_i32_1 = arith.constant 0 : i32
    return %c0_i32, %c0_i32_0 : i32, i32
  }
  func.func @transform_3(%arg0: i32) -> (i32, i32) {
    %c0_i32 = arith.constant 0 : i32
    %c0_i32_0 = arith.constant 0 : i32
    %c0_i32_1 = arith.constant 0 : i32
    return %c0_i32, %c0_i32_0 : i32, i32
  }
  func.func @transform_4(%arg0: i32) -> (i32, i32) {
    %c0_i32 = arith.constant 0 : i32
    %c0_i32_0 = arith.constant 0 : i32
    %c0_i32_1 = arith.constant 0 : i32
    return %c0_i32, %c0_i32_0 : i32, i32
  }
  func.func @transform_5(%arg0: i32) -> (i32, i32) {
    %c0_i32 = arith.constant 0 : i32
    %c0_i32_0 = arith.constant 0 : i32
    return %arg0, %c0_i32 : i32, i32
  }
}

</mosaic_0001>

<llo_original>
// kernel: _qnet_forward.1
$region0: #{_qnet_forward.1}
  #allocation0 [shape = 'u32[]', space=smem, size = 0x4, offset = 0x4, fixed_abs, tag = 'smem constant byte address 0x4 - core index']
  #allocation1 [shape = 'u32[144,128]{1,0:T(1,128)}', space=vmem, size = 0x12000, scoped, tag = 'internal scratch']
  %s0 = inlined_call_operand.vmem [shape: f32[4,16], index: 0, kind: input, shape index: {}]
  %s1 = inlined_call_operand.hbm [shape: f32[16,128], index: 1, kind: input, shape index: {}]
  %s2 = inlined_call_operand.vmem [shape: f32[1,128], index: 2, kind: input, shape index: {}]
  %s3 = inlined_call_operand.hbm [shape: f32[128,128], index: 3, kind: input, shape index: {}]
  %s4 = inlined_call_operand.vmem [shape: f32[1,128], index: 4, kind: input, shape index: {}]
  %s5 = inlined_call_operand.hbm [shape: f32[4,128], index: 5, kind: output, shape index: {}]
  %s6 = sld [smem:[#allocation0]]
  $region38: #{_qnet_forward.1} parent=0
    _
  %s8 = ssub.s32 1, %s6
  %s9 = scalar_select 0, %s8, %s6
  $region1: #{_qnet_forward.1} parent=0
    #allocation2 [shape = 'u8[8192]{0}', space=vmem, size = 0x2000, scoped, tag = 'input window, operand 1, single buffered']
    #allocation3 [shape = 's32[1]{0}', space=sflag, size = 0x4, scoped, tag = 'scoped memory for _qnet_forward.1']
    #allocation4 [shape = 's32[1]{0}', space=sflag, size = 0x4, scoped, tag = 'scoped memory for _qnet_forward.1']
    #allocation5 [shape = 'u8[65536]{0}', space=vmem, size = 0x10000, scoped, tag = 'input window, operand 3, single buffered']
    #allocation6 [shape = 's32[1]{0}', space=sflag, size = 0x4, scoped, tag = 'scoped memory for _qnet_forward.1']
    #allocation7 [shape = 'u8[2048]{0}', space=vmem, size = 0x800, scoped, tag = 'output window, operand 0, single buffered']
    %10 = vsyncpa [#allocation3], 0
    %11 = vsyncpa [#allocation6], 0
    %12 = vsyncpa [#allocation4], 0
    // Predicated region
    $region2: #{_qnet_forward.1} parent=1 // pred_check
      _
    $region3: #{_qnet_forward.1} parent=1 // pred_check_branch
      %14 = sbr.rel (0) target = $region5
    $region4: #{_qnet_forward.1} parent=1 // pred_region
      _
    $region5: #{_qnet_forward.1} parent=1 // pred_fallthru
      _
    // Predicated region
    $region6: #{_qnet_forward.1} parent=1 // pred_check
      _
    $region7: #{_qnet_forward.1} parent=1 // pred_check_branch
      %16 = sbr.rel (0) target = $region9
    $region8: #{_qnet_forward.1} parent=1 // pred_region
      %s18 = ssub.s32 256, 256
      %19 = vsyncadd [#allocation3], %s18
      %s20 = sshll.u32 [#allocation2], 4
      %s21 = int_to_ptr.vmem [resolvable:$true] %s20
      %26 = dma.hbm_to_vmem [thread:$0]  %s1, 256, %s21, [#allocation3], 128, 128, 8
    $region9: #{_qnet_forward.1} parent=1 // pred_fallthru
      _
    // Predicated region
    $region10: #{_qnet_forward.1} parent=1 // pred_check
      _
    $region11: #{_qnet_forward.1} parent=1 // pred_check_branch
      %28 = sbr.rel (0) target = $region13
    $region12: #{_qnet_forward.1} parent=1 // pred_region
      _
    $region13: #{_qnet_forward.1} parent=1 // pred_fallthru
      _
    // Predicated region
    $region14: #{_qnet_forward.1} parent=1 // pred_check
      _
    $region15: #{_qnet_forward.1} parent=1 // pred_check_branch
      %30 = sbr.rel (0) target = $region17
    $region16: #{_qnet_forward.1} parent=1 // pred_region
      %s32 = ssub.s32 2048, 2048
      %33 = vsyncadd [#allocation6], %s32
      %s34 = sshll.u32 [#allocation5], 4
      %s35 = int_to_ptr.vmem [resolvable:$true] %s34
      %40 = dma.hbm_to_vmem [thread:$0]  %s3, 2048, %s35, [#allocation6], 128, 128, 8
    $region17: #{_qnet_forward.1} parent=1 // pred_fallthru
      _
    // Predicated region
    $region18: #{_qnet_forward.1} parent=1 // pred_check
      _
    $region19: #{_qnet_forward.1} parent=1 // pred_check_branch
      %42 = sbr.rel (0) target = $region21
    $region20: #{_qnet_forward.1} parent=1 // pred_region
      _
    $region21: #{_qnet_forward.1} parent=1 // pred_fallthru
      _
    // Predicated region
    $region22: #{_qnet_forward.1} parent=1 // pred_check
      _
    $region23: #{_qnet_forward.1} parent=1 // pred_check_branch
      %44 = sbr.rel (0) target = $region25
    $region24: #{_qnet_forward.1} parent=1 // pred_region
      %45 = dma.done [#allocation3], 256
    $region25: #{_qnet_forward.1} parent=1 // pred_fallthru
      _
    // Predicated region
    $region26: #{_qnet_forward.1} parent=1 // pred_check
      _
    $region27: #{_qnet_forward.1} parent=1 // pred_check_branch
      %47 = sbr.rel (0) target = $region29
    $region28: #{_qnet_forward.1} parent=1 // pred_region
      %48 = dma.done [#allocation6], 2048
    $region29: #{_qnet_forward.1} parent=1 // pred_fallthru
      _
    %v49 = vld [vmem:[%s0] sm:$0xf]
    %v50 = vld [vmem:[#allocation2] sm:$0xff]
    %v51 = vld [vmem:[#allocation2 + $0x8] sm:$0xff]
    %v52 = vld [vmem:[%s2] sm:$0x1]
    %v54 = vlaneseq
    %v55 = vshrl.u32 %v54, 7
    %v56 = vsub.s32 0, %v55
    %v57 = vrot.slane %v52, %v56
    %vm59 = vcmask 130048
    %v61 = vsel %vm59, %v49, 0
    %63 = vmatprep.subr.mxu0 0.0
    %64 = vmatpush1.msra.mxu0 %v50
    %65 = vmatprep.subr.mxu0 0.0
    %66 = vmatpush1.msra.mxu0 %v51
    %67 = vmatprep.subr.mxu0 0.0
    %68 = vmatpush1.msra.mxu0 0.0
    %69 = vmatprep.subr.mxu0 0.0
    %70 = vmatpush1.msra.mxu0 0.0
    %71 = vmatprep.subr.mxu0 0.0
    %72 = vmatpush1.msra.mxu0 0.0
    %73 = vmatprep.subr.mxu0 0.0
    %74 = vmatpush1.msra.mxu0 0.0
    %75 = vmatprep.subr.mxu0 0.0
    %76 = vmatpush1.msra.mxu0 0.0
    %77 = vmatprep.subr.mxu0 0.0
    %78 = vmatpush1.msra.mxu0 0.0
    %79 = vmatprep.subr.mxu0 0.0
    %80 = vmatpush1.msra.mxu0 0.0
    %81 = vmatprep.subr.mxu0 0.0
    %82 = vmatpush1.msra.mxu0 0.0
    %83 = vmatprep.subr.mxu0 0.0
    %84 = vmatpush1.msra.mxu0 0.0
    %85 = vmatprep.subr.mxu0 0.0
    %86 = vmatpush1.msra.mxu0 0.0
    %87 = vmatprep.subr.mxu0 0.0
    %88 = vmatpush1.msra.mxu0 0.0
    %89 = vmatprep.subr.mxu0 0.0
    %90 = vmatpush1.msra.mxu0 0.0
    %91 = vmatprep.subr.mxu0 0.0
    %92 = vmatpush1.msra.mxu0 0.0
    %93 = vmatprep.subr.mxu0 0.0
    %94 = vmatpush1.msra.mxu0 0.0
    %95 = vmatprep.subr.mxu0 0.0
    %96 = vmatpush1.msra.mxu0 0.0
    %97 = vmatprep.subr.mxu0 0.0
    %98 = vmatpush1.msra.mxu0 0.0
    %99 = vmatprep.subr.mxu0 0.0
    %100 = vmatpush1.msra.mxu0 0.0
    %101 = vmatprep.subr.mxu0 0.0
    %102 = vmatpush1.msra.mxu0 0.0
    %103 = vmatprep.subr.mxu0 0.0
    %104 = vmatpush1.msra.mxu0 0.0
    %105 = vmatprep.subr.mxu0 0.0
    %106 = vmatpush1.msra.mxu0 0.0
    %107 = vmatprep.subr.mxu0 0.0
    %108 = vmatpush1.msra.mxu0 0.0
    %109 = vmatprep.subr.mxu0 0.0
    %110 = vmatpush1.msra.mxu0 0.0
    %111 = vmatprep.subr.mxu0 0.0
    %112 = vmatpush1.msra.mxu0 0.0
    %113 = vmatprep.subr.mxu0 0.0
    %114 = vmatpush1.msra.mxu0 0.0
    %115 = vmatprep.subr.mxu0 0.0
    %116 = vmatpush1.msra.mxu0 0.0
    %117 = vmatprep.subr.mxu0 0.0
    %118 = vmatpush1.msra.mxu0 0.0
    %119 = vmatprep.subr.mxu0 0.0
    %120 = vmatpush1.msra.mxu0 0.0
    %121 = vmatprep.subr.mxu0 0.0
    %122 = vmatpush1.msra.mxu0 0.0
    %123 = vmatprep.subr.mxu0 0.0
    %124 = vmatpush1.msra.mxu0 0.0
    %125 = vmatprep.subr.mxu0 0.0
    %126 = vmatpush1.msra.mxu0 0.0
    %127 = vmatprep.mubr.f32.mxu0 0.0
    %128 = vmatmul.mubr.f32.gmra.mrb[0].mxu0 %v61
    %v129 = vpop.f32.mrb[0].mxu0
    %v130 = vadd.f32 %v57, %v129
    %v131 = vpop.f32.mrb[0].mxu0
    %132 = vdwg.mxu0
    %v133 = vmax.f32 %v130, 0.0
    %v134 = vld [vmem:[#allocation5] sm:$0xff]
    %v135 = vld [vmem:[#allocation5 + $0x8] sm:$0xff]
    %v136 = vld [vmem:[#allocation5 + $0x10] sm:$0xff]
    %v137 = vld [vmem:[#allocation5 + $0x18] sm:$0xff]
    %v138 = vld [vmem:[#allocation5 + $0x20] sm:$0xff]
    %v139 = vld [vmem:[#allocation5 + $0x28] sm:$0xff]
    %v140 = vld [vmem:[#allocation5 + $0x30] sm:$0xff]
    %v141 = vld [vmem:[#allocation5 + $0x38] sm:$0xff]
    %v142 = vld [vmem:[#allocation5 + $0x40] sm:$0xff]
    %v143 = vld [vmem:[#allocation5 + $0x48] sm:$0xff]
    %v144 = vld [vmem:[#allocation5 + $0x50] sm:$0xff]
    %v145 = vld [vmem:[#allocation5 + $0x58] sm:$0xff]
    %v146 = vld [vmem:[#allocation5 + $0x60] sm:$0xff]
    %v147 = vld [vmem:[#allocation5 + $0x68] sm:$0xff]
    %v148 = vld [vmem:[#allocation5 + $0x70] sm:$0xff]
    %v149 = vld [vmem:[#allocation5 + $0x78] sm:$0xff]
    %v150 = vld [vmem:[%s4] sm:$0x1]
    %v152 = vlaneseq
    %v153 = vshrl.u32 %v152, 7
    %v154 = vsub.s32 0, %v153
    %v155 = vrot.slane %v150, %v154
    %157 = vmatprep.subr.mxu0 0.0
    %158 = vmatpush1.msra.mxu0 %v134
    %159 = vmatprep.subr.mxu0 0.0
    %160 = vmatpush1.msra.mxu0 %v135
    %161 = vmatprep.subr.mxu0 0.0
    %162 = vmatpush1.msra.mxu0 %v136
    %163 = vmatprep.subr.mxu0 0.0
    %164 = vmatpush1.msra.mxu0 %v137
    %165 = vmatprep.subr.mxu0 0.0
    %166 = vmatpush1.msra.mxu0 %v138
    %167 = vmatprep.subr.mxu0 0.0
    %168 = vmatpush1.msra.mxu0 %v139
    %169 = vmatprep.subr.mxu0 0.0
    %170 = vmatpush1.msra.mxu0 %v140
    %171 = vmatprep.subr.mxu0 0.0
    %172 = vmatpush1.msra.mxu0 %v141
    %173 = vmatprep.subr.mxu0 0.0
    %174 = vmatpush1.msra.mxu0 %v142
    %175 = vmatprep.subr.mxu0 0.0
    %176 = vmatpush1.msra.mxu0 %v143
    %177 = vmatprep.subr.mxu0 0.0
    %178 = vmatpush1.msra.mxu0 %v144
    %179 = vmatprep.subr.mxu0 0.0
    %180 = vmatpush1.msra.mxu0 %v145
    %181 = vmatprep.subr.mxu0 0.0
    %182 = vmatpush1.msra.mxu0 %v146
    %183 = vmatprep.subr.mxu0 0.0
    %184 = vmatpush1.msra.mxu0 %v147
    %185 = vmatprep.subr.mxu0 0.0
    %186 = vmatpush1.msra.mxu0 %v148
    %187 = vmatprep.subr.mxu0 0.0
    %188 = vmatpush1.msra.mxu0 %v149
    %189 = vmatprep.subr.mxu0 0.0
    %190 = vmatpush1.msra.mxu0 0.0
    %191 = vmatprep.subr.mxu0 0.0
    %192 = vmatpush1.msra.mxu0 0.0
    %193 = vmatprep.subr.mxu0 0.0
    %194 = vmatpush1.msra.mxu0 0.0
    %195 = vmatprep.subr.mxu0 0.0
    %196 = vmatpush1.msra.mxu0 0.0
    %197 = vmatprep.subr.mxu0 0.0
    %198 = vmatpush1.msra.mxu0 0.0
    %199 = vmatprep.subr.mxu0 0.0
    %200 = vmatpush1.msra.mxu0 0.0
    %201 = vmatprep.subr.mxu0 0.0
    %202 = vmatpush1.msra.mxu0 0.0
    %203 = vmatprep.subr.mxu0 0.0
    %204 = vmatpush1.msra.mxu0 0.0
    %205 = vmatprep.subr.mxu0 0.0
    %206 = vmatpush1.msra.mxu0 0.0
    %207 = vmatprep.subr.mxu0 0.0
    %208 = vmatpush1.msra.mxu0 0.0
    %209 = vmatprep.subr.mxu0 0.0
    %210 = vmatpush1.msra.mxu0 0.0
    %211 = vmatprep.subr.mxu0 0.0
    %212 = vmatpush1.msra.mxu0 0.0
    %213 = vmatprep.subr.mxu0 0.0
    %214 = vmatpush1.msra.mxu0 0.0
    %215 = vmatprep.subr.mxu0 0.0
    %216 = vmatpush1.msra.mxu0 0.0
    %217 = vmatprep.subr.mxu0 0.0
    %218 = vmatpush1.msra.mxu0 0.0
    %219 = vmatprep.subr.mxu0 0.0
    %220 = vmatpush1.msra.mxu0 0.0
    %221 = vmatprep.mubr.f32.mxu0 0.0
    %222 = vmatmul.mubr.f32.gmra.mrb[0].mxu0 %v133
    %v223 = vpop.f32.mrb[0].mxu0
    %v224 = vadd.f32 %v155, %v223
    %v225 = vpop.f32.mrb[0].mxu0
    %226 = vdwg.mxu0
    %227 = vst [vmem:[#allocation7] sm:$0xf] %v224
    // Predicated region
    $region30: #{_qnet_forward.1} parent=1 // pred_check
      _
    $region31: #{_qnet_forward.1} parent=1 // pred_check_branch
      %229 = sbr.rel (0) target = $region33
    $region32: #{_qnet_forward.1} parent=1 // pred_region
      %s231 = ssub.s32 64, 64
      %232 = vsyncadd [#allocation4], %s231
      %s234 = sshll.u32 [#allocation7], 4
      %s235 = int_to_ptr.vmem [resolvable:$true] %s234
      %237 = dma.vmem_to_hbm [thread:$0]  %s235, 64, %s5, [#allocation4]
    $region33: #{_qnet_forward.1} parent=1 // pred_fallthru
      _
    // Predicated region
    $region34: #{_qnet_forward.1} parent=1 // pred_check
      _
    $region35: #{_qnet_forward.1} parent=1 // pred_check_branch
      %239 = sbr.rel (0) target = $region37
    $region36: #{_qnet_forward.1} parent=1 // pred_region
      %240 = dma.done [#allocation4], 64
    $region37: #{_qnet_forward.1} parent=1 // pred_fallthru
      _
    %241 = vsyncpa [#allocation3], 1
    %242 = vsyncpa [#allocation6], 1
    %243 = vsyncpa [#allocation4], 1

</llo_original>
